<compile_context>
chip_gen: v7x
topology: tpu7x:2x2x1
jax: 0.10.0
libtpu: 0.0.40
codegen_flags: <defaults>
</compile_context>

<pallas_src>
import functools

import jax
import jax.numpy as jnp
from jax import lax
from jax.experimental import pallas as pl
from jax.experimental.pallas import tpu as pltpu


def _round_up(x, m):
    return (x + m - 1) // m * m


def _vmem_capacity_bytes():
    """Physical VMEM of the local TPU generation; conservative 64 MiB (v7x) fallback."""
    try:
        return int(pltpu.get_tpu_info().vmem_capacity_bytes)
    except Exception:
        return 64 * 1024 * 1024


def _conv3x3_im2col_kernel(body_ref, halo_ref, w_ref, b_ref, o_ref, win_ref, col_ref,
                           *, cin_p, th, width):
    """One (batch, row-tile) step of the 3x3 'same' conv as a single im2col matmul.

    body_ref : (1, Cin_p, TH*W)       non-overlapping row tile, rows flattened onto lanes.
    halo_ref : (1, 1, Cin_p, 2*W)     [row above tile | row below tile] (zeros at the borders).
    w_ref    : (Cout, 9*Cin_p)        bf16 weights, column index = (dy*3 + dx)*Cin_p + c.
    b_ref    : (Cout, 1)              f32 bias.
    o_ref    : (1, Cout, TH*W)        conv output tile (lane-dense).
    win_ref  : (Cin_p, (TH+2)*W + 2)  VMEM window scratch (halo + body + halo, +-1 element pad).
    col_ref  : (9*Cin_p, TH*W)        bf16 im2col scratch.
    """
    thw = th * width

    # ---- assemble the padded row window: [0 | top halo row | body rows | bottom halo row | 0]
    win_ref[:, 0:1] = jnp.zeros((cin_p, 1), win_ref.dtype)
    win_ref[:, 1:1 + width] = halo_ref[0, 0, :, :width]
    win_ref[:, 1 + width:1 + width + thw] = body_ref[0]
    win_ref[:, 1 + width + thw:1 + (th + 2) * width] = halo_ref[0, 0, :, width:]
    win_ref[:, 1 + (th + 2) * width:] = jnp.zeros((cin_p, 1), win_ref.dtype)

    # x-position of every flattened output pixel; the dx edge masks ARE the width zero-padding.
    xpos = lax.broadcasted_iota(jnp.int32, (1, thw), 1) % width
    left_edge = xpos == 0
    right_edge = xpos == width - 1

    # ---- im2col: each tap is a flat lane shift of the window; store bf16, sublane-aligned.
    for dy in range(3):
        for dx in range(3):
            k = dy * 3 + dx
            s = dy * width + dx
            tap = win_ref[:, s:s + thw]                      # (Cin_p, TH*W)
            if dx == 0:
                tap = jnp.where(left_edge, 0.0, tap)
            elif dx == 2:
                tap = jnp.where(right_edge, 0.0, tap)
            col_ref[k * cin_p:(k + 1) * cin_p, :] = tap.astype(col_ref.dtype)

    # ---- single MXU pass: (Cout, 9*Cin_p) @ (9*Cin_p, TH*W), bf16 in, f32 accumulation.
    acc = jnp.dot(w_ref[...], col_ref[...], preferred_element_type=jnp.float32)
    o_ref[0] = (acc + b_ref[...]).astype(o_ref.dtype)        # f32 epilogue (bias + cast)


def _tile_vmem_bytes(th, width, cin_p, cout, itemsize):
    """Per-tile VMEM footprint (double-buffered in/out blocks + scratch + weights)."""
    thw = th * width
    body = cin_p * thw * itemsize
    halo = cin_p * 2 * width * itemsize
    outb = cout * thw * itemsize
    col = 9 * cin_p * thw * 2                                # bf16 col scratch
    win = cin_p * ((th + 2) * width + 2) * itemsize
    wmat = cout * 9 * cin_p * 2 + cout * 4
    return 2 * (body + halo) + 2 * outb + col + win + 2 * wmat


def _pick_tile_h(n, height, width, cin_p, cout, itemsize, vmem_budget):
    """Largest divisor TH of H with a lane-dense output tile that fits the VMEM budget."""
    cands = [t for t in range(1, height + 1)
             if height % t == 0
             and ((t * width) % 128 == 0 or t == height)
             and _tile_vmem_bytes(t, width, cin_p, cout, itemsize) <= vmem_budget]
    if not cands:
        raise ValueError(
            f"no row-tile size for H={height}, W={width}, Cin_p={cin_p}, Cout={cout} "
            f"satisfies (TH*W %% 128 == 0 or TH == H) within the {vmem_budget} byte VMEM budget")
    # keep the grid >= 2 steps so both v7x TensorCores get work even at small N.
    busy = [t for t in cands if n * (height // t) >= 2]
    return max(busy) if busy else max(cands)


def conv3x3_pixelshuffle(x_nchw, w_oihw, bias, upscale_factor, *, tile_h=None):
    """UpsampleBlock forward. x_nchw: (N, C, H, W) -> (N, C, H*r, W*r)."""
    n, cin, height, width = x_nchw.shape
    cout = w_oihw.shape[0]
    r = upscale_factor
    assert cout == cin * r * r and w_oihw.shape[1:] == (cin, 3, 3)

    cin_p = _round_up(cin, 8)                 # sublane-aligned tap groups in the col matrix
    itemsize = jnp.dtype(x_nchw.dtype).itemsize

    vmem_cap = _vmem_capacity_bytes()
    vmem_limit = int(min(0.85 * vmem_cap, 100 * 1024 * 1024))
    vmem_budget = max(vmem_limit - 4 * 1024 * 1024, 8 * 1024 * 1024)

    if tile_h is None:
        th = _pick_tile_h(n, height, width, cin_p, cout, itemsize, vmem_budget)
    else:
        th = tile_h
        if height % th:
            raise ValueError(f"tile_h={th} must divide H={height}")
        if (th * width) % 128 != 0 and th != height:
            raise ValueError(f"tile_h={th}: TH*W={th * width} must be a multiple of 128 (or TH == H)")
    n_tiles = height // th
    thw = th * width

    # ---- HBM-side prep: cheap pads/slices only; no halo-tile materialization. ----
    x_p = x_nchw if cin_p == cin else jnp.pad(
        x_nchw, ((0, 0), (0, cin_p - cin), (0, 0), (0, 0)))
    x_body = x_p.reshape(n, cin_p, height * width)            # rows -> lane axis (free reshape)

    # tiny halo array: for each row-tile t, the single row above and below it.
    if n_tiles > 1:
        zrow = jnp.zeros((n, cin_p, 1, width), x_p.dtype)
        top = jnp.concatenate([zrow, x_p[:, :, th - 1:height - 1:th, :]], axis=2)
        bot = jnp.concatenate([x_p[:, :, th:height:th, :], zrow], axis=2)
        halo = jnp.stack([top, bot], axis=3)                   # (N, Cin_p, nT, 2, W)
        halo = jnp.transpose(halo, (0, 2, 1, 3, 4)).reshape(n, n_tiles, cin_p, 2 * width)
    else:
        halo = jnp.zeros((n, 1, cin_p, 2 * width), x_p.dtype)

    # weight matrix, column index = (dy*3 + dx)*Cin_p + c (zero for padded channels); bf16 for MXU.
    w_t = jnp.transpose(w_oihw, (0, 2, 3, 1))                  # (Cout, 3, 3, Cin)
    if cin_p != cin:
        w_t = jnp.pad(w_t, ((0, 0), (0, 0), (0, 0), (0, cin_p - cin)))
    w_mat = w_t.reshape(cout, 9 * cin_p).astype(jnp.bfloat16)
    b_mat = bias.reshape(cout, 1).astype(jnp.float32)

    kernel = functools.partial(_conv3x3_im2col_kernel, cin_p=cin_p, th=th, width=width)
    conv_flat = pl.pallas_call(
        kernel,
        out_shape=jax.ShapeDtypeStruct((n, cout, height * width), x_nchw.dtype),
        grid_spec=pltpu.PrefetchScalarGridSpec(
            num_scalar_prefetch=0,
            grid=(n, n_tiles),
            in_specs=[
                pl.BlockSpec((1, cin_p, thw), lambda i, t: (i, 0, t)),
                pl.BlockSpec((1, 1, cin_p, 2 * width), lambda i, t: (i, t, 0, 0)),
                pl.BlockSpec((cout, 9 * cin_p), lambda i, t: (0, 0)),
                pl.BlockSpec((cout, 1), lambda i, t: (0, 0)),
            ],
            out_specs=pl.BlockSpec((1, cout, thw), lambda i, t: (i, 0, t)),
            scratch_shapes=[
                pltpu.VMEM((cin_p, (th + 2) * width + 2), x_nchw.dtype),
                pltpu.VMEM((9 * cin_p, thw), jnp.bfloat16),
            ],
        ),
        compiler_params=pltpu.CompilerParams(
            dimension_semantics=("parallel", "parallel"),
            vmem_limit_bytes=vmem_limit,
        ),
    )(x_body, halo, w_mat, b_mat)

    # ---- PixelShuffle(r): conv channel c*r*r + i*r + j -> output pixel (h*r + i, w*r + j) ----
    # TODO(synk): fuse this transpose into the kernel's store (needs lane-strided stores or an
    # in-register (w, j) lane interleave) to remove the one remaining output-sized HBM pass.
    y = conv_flat.reshape(n, cin, r, r, height, width)
    y = jnp.transpose(y, (0, 1, 4, 2, 5, 3))
    return y.reshape(n, cin, height * r, width * r)


if __name__ == "__main__":
    # Small deterministic example: batch=2, channels=4, spatial=16x16, upscale=2.
    N, C, H, W = 2, 4, 16, 16
    r = 2
    Cout = C * r * r

    key = jax.random.PRNGKey(0)
    kx, kw, kb = jax.random.split(key, 3)
    x = jax.random.normal(kx, (N, C, H, W), jnp.float32)
    w = jax.random.normal(kw, (Cout, C, 3, 3), jnp.float32) * 0.1   # Conv2d OIHW weight
    b = jax.random.normal(kb, (Cout,), jnp.float32) * 0.1

    # tile_h=8 -> grid (2, 2): exercises the multi-row-tile path and real (non-zero) halo rows.
    out = conv3x3_pixelshuffle(x, w, b, r, tile_h=8)
    out = jax.block_until_ready(out)
    assert out.shape == (N, C, H * r, W * r)

    # Reference: XLA conv on the same bf16-rounded operands (the kernel feeds the MXU in bf16
    # with f32 accumulation), followed by the same pixel shuffle.
    xb = x.astype(jnp.bfloat16).astype(jnp.float32)
    wb = w.astype(jnp.bfloat16).astype(jnp.float32)
    ref_conv = lax.conv_general_dilated(
        xb, wb, window_strides=(1, 1), padding=((1, 1), (1, 1)),
        dimension_numbers=("NCHW", "OIHW", "NCHW")) + b[None, :, None, None]
    ref = ref_conv.reshape(N, C, r, r, H, W)
    ref = jnp.transpose(ref, (0, 1, 4, 2, 5, 3)).reshape(N, C, H * r, W * r)
    err = jnp.max(jnp.abs(out - ref))
    assert err < 1e-3, err

    print("KERNEL_OK")
</pallas_src>

<mosaic_0001>
module attributes {stable_mosaic.version = 11 : i64} {
  func.func @_conv3x3_im2col_kernel(%arg0: i32, %arg1: i32, %arg2: memref<1x8x128xf32, #tpu.memory_space<vmem>>, %arg3: memref<1x1x8x32xf32, #tpu.memory_space<vmem>>, %arg4: memref<16x72xbf16, #tpu.memory_space<vmem>>, %arg5: memref<16x1xf32, #tpu.memory_space<vmem>>, %arg6: memref<1x16x128xf32, #tpu.memory_space<vmem>>, %arg7: memref<8x162xf32, #tpu.memory_space<vmem>>, %arg8: memref<72x128xbf16, #tpu.memory_space<vmem>>) attributes {dimension_semantics = [#tpu.dimension_semantics<parallel>, #tpu.dimension_semantics<parallel>], iteration_bounds = array<i64: 2, 2>, scalar_prefetch = 0 : i64, scratch_operands = 2 : i64, tpu.core_type = #tpu.core_type<tc>, window_params = [{transform_indices = @transform_0, window_bounds = array<i64: 1, 8, 128>}, {transform_indices = @transform_1, window_bounds = array<i64: 1, 1, 8, 32>}, {pipeline_mode = #tpu.pipeline_mode<synchronous>, transform_indices = @transform_2, window_bounds = array<i64: 16, 72>}, {pipeline_mode = #tpu.pipeline_mode<synchronous>, transform_indices = @transform_3, window_bounds = array<i64: 16, 1>}, {transform_indices = @transform_4, window_bounds = array<i64: 1, 16, 128>}]} {
    %cst = arith.constant 0.000000e+00 : f32
    %0 = vector.broadcast %cst : f32 to vector<8x1xf32>
    %c0 = arith.constant 0 : index
    %c0_0 = arith.constant 0 : index
    %1 = vector.load %arg7[%c0, %c0_0] : memref<8x162xf32, #tpu.memory_space<vmem>>, vector<8x1xf32>
    tpu.vector_store %arg7[%c0, %c0_0], %0 {strides = array<i32>} : memref<8x162xf32, #tpu.memory_space<vmem>>, vector<8x1xf32>,
    %c0_1 = arith.constant 0 : index
    %c0_2 = arith.constant 0 : index
    %c0_3 = arith.constant 0 : index
    %c0_4 = arith.constant 0 : index
    %2 = vector.load %arg3[%c0_1, %c0_2, %c0_3, %c0_4] : memref<1x1x8x32xf32, #tpu.memory_space<vmem>>, vector<1x1x8x16xf32>
    %3 = vector.shape_cast %2 : vector<1x1x8x16xf32> to vector<8x16xf32>
    %c0_5 = arith.constant 0 : index
    %c1 = arith.constant 1 : index
    %4 = vector.load %arg7[%c0_5, %c1] : memref<8x162xf32, #tpu.memory_space<vmem>>, vector<8x16xf32>
    tpu.vector_store %arg7[%c0_5, %c1], %3 {strides = array<i32>} : memref<8x162xf32, #tpu.memory_space<vmem>>, vector<8x16xf32>,
    %c0_6 = arith.constant 0 : index
    %c0_7 = arith.constant 0 : index
    %c0_8 = arith.constant 0 : index
    %5 = vector.load %arg2[%c0_6, %c0_7, %c0_8] : memref<1x8x128xf32, #tpu.memory_space<vmem>>, vector<1x8x128xf32>
    %6 = vector.shape_cast %5 : vector<1x8x128xf32> to vector<8x128xf32>
    %c0_9 = arith.constant 0 : index
    %c17 = arith.constant 17 : index
    %7 = vector.load %arg7[%c0_9, %c17] : memref<8x162xf32, #tpu.memory_space<vmem>>, vector<8x128xf32>
    tpu.vector_store %arg7[%c0_9, %c17], %6 {strides = array<i32>} : memref<8x162xf32, #tpu.memory_space<vmem>>, vector<8x128xf32>,
    %c0_10 = arith.constant 0 : index
    %c0_11 = arith.constant 0 : index
    %c0_12 = arith.constant 0 : index
    %c16 = arith.constant 16 : index
    %8 = vector.load %arg3[%c0_10, %c0_11, %c0_12, %c16] : memref<1x1x8x32xf32, #tpu.memory_space<vmem>>, vector<1x1x8x16xf32>
    %9 = vector.shape_cast %8 : vector<1x1x8x16xf32> to vector<8x16xf32>
    %c0_13 = arith.constant 0 : index
    %c145 = arith.constant 145 : index
    %10 = vector.load %arg7[%c0_13, %c145] : memref<8x162xf32, #tpu.memory_space<vmem>>, vector<8x16xf32>
    tpu.vector_store %arg7[%c0_13, %c145], %9 {strides = array<i32>} : memref<8x162xf32, #tpu.memory_space<vmem>>, vector<8x16xf32>,
    %cst_14 = arith.constant 0.000000e+00 : f32
    %11 = vector.broadcast %cst_14 : f32 to vector<8x1xf32>
    %c0_15 = arith.constant 0 : index
    %c161 = arith.constant 161 : index
    %12 = vector.load %arg7[%c0_15, %c161] : memref<8x162xf32, #tpu.memory_space<vmem>>, vector<8x1xf32>
    tpu.vector_store %arg7[%c0_15, %c161], %11 {strides = array<i32>} : memref<8x162xf32, #tpu.memory_space<vmem>>, vector<8x1xf32>,
    %13 = tpu.iota {dimensions = array<i32: 1>} : vector<1x128xi32>
    %c16_i32 = arith.constant 16 : i32
    %c0_i32 = arith.constant 0 : i32
    %14 = arith.cmpi eq, %c16_i32, %c0_i32 : i32
    %c1_i32 = arith.constant 1 : i32
    %15 = arith.select %14, %c1_i32, %c16_i32 : i32
    %16 = vector.broadcast %15 : i32 to vector<1x128xi32>
    %17 = arith.remsi %13, %16 : vector<1x128xi32>
    %c0_i32_16 = arith.constant 0 : i32
    %18 = vector.broadcast %c0_i32_16 : i32 to vector<1x128xi32>
    %19 = arith.cmpi ne, %17, %18 : vector<1x128xi32>
    %c0_i32_17 = arith.constant 0 : i32
    %20 = vector.broadcast %c0_i32_17 : i32 to vector<1x128xi32>
    %21 = arith.cmpi slt, %17, %20 : vector<1x128xi32>
    %c0_i32_18 = arith.constant 0 : i32
    %22 = arith.cmpi slt, %15, %c0_i32_18 : i32
    %23 = vector.broadcast %22 : i1 to vector<1x128xi1>
    %24 = vector.broadcast %23 : vector<1x128xi1> to vector<1x128xi1>
    %25 = arith.xori %21, %24 : vector<1x128xi1>
    %26 = arith.andi %25, %19 : vector<1x128xi1>
    %27 = vector.broadcast %15 : i32 to vector<1x128xi32>
    %28 = arith.addi %17, %27 : vector<1x128xi32>
    %29 = arith.select %26, %28, %17 : vector<1x128xi1>, vector<1x128xi32>
    %c0_i32_19 = arith.constant 0 : i32
    %30 = vector.broadcast %c0_i32_19 : i32 to vector<1x128xi32>
    %31 = arith.cmpi eq, %29, %30 : vector<1x128xi32>
    %c15_i32 = arith.constant 15 : i32
    %32 = vector.broadcast %c15_i32 : i32 to vector<1x128xi32>
    %33 = arith.cmpi eq, %29, %32 : vector<1x128xi32>
    %c0_20 = arith.constant 0 : index
    %c0_21 = arith.constant 0 : index
    %34 = vector.load %arg7[%c0_20, %c0_21] : memref<8x162xf32, #tpu.memory_space<vmem>>, vector<8x128xf32>
    %cst_22 = arith.constant 0.000000e+00 : f32
    %35 = vector.shape_cast %31 : vector<1x128xi1> to vector<1x128xi1>
    %36 = vector.broadcast %35 : vector<1x128xi1> to vector<8x128xi1>
    %37 = vector.broadcast %cst_22 : f32 to vector<8x128xf32>
    %38 = arith.select %36, %37, %34 : vector<8x128xi1>, vector<8x128xf32>
    %39 = arith.truncf %38 : vector<8x128xf32> to vector<8x128xbf16>
    %c0_23 = arith.constant 0 : index
    %c0_24 = arith.constant 0 : index
    %40 = vector.load %arg8[%c0_23, %c0_24] : memref<72x128xbf16, #tpu.memory_space<vmem>>, vector<8x128xbf16>
    tpu.vector_store %arg8[%c0_23, %c0_24], %39 {strides = array<i32>} : memref<72x128xbf16, #tpu.memory_space<vmem>>, vector<8x128xbf16>,
    %c0_25 = arith.constant 0 : index
    %c1_26 = arith.constant 1 : index
    %41 = vector.load %arg7[%c0_25, %c1_26] : memref<8x162xf32, #tpu.memory_space<vmem>>, vector<8x128xf32>
    %42 = arith.truncf %41 : vector<8x128xf32> to vector<8x128xbf16>
    %c8 = arith.constant 8 : index
    %c0_27 = arith.constant 0 : index
    %43 = vector.load %arg8[%c8, %c0_27] : memref<72x128xbf16, #tpu.memory_space<vmem>>, vector<8x128xbf16>
    tpu.vector_store %arg8[%c8, %c0_27], %42 {strides = array<i32>} : memref<72x128xbf16, #tpu.memory_space<vmem>>, vector<8x128xbf16>,
    %c0_28 = arith.constant 0 : index
    %c2 = arith.constant 2 : index
    %44 = vector.load %arg7[%c0_28, %c2] : memref<8x162xf32, #tpu.memory_space<vmem>>, vector<8x128xf32>
    %cst_29 = arith.constant 0.000000e+00 : f32
    %45 = vector.shape_cast %33 : vector<1x128xi1> to vector<1x128xi1>
    %46 = vector.broadcast %45 : vector<1x128xi1> to vector<8x128xi1>
    %47 = vector.broadcast %cst_29 : f32 to vector<8x128xf32>
    %48 = arith.select %46, %47, %44 : vector<8x128xi1>, vector<8x128xf32>
    %49 = arith.truncf %48 : vector<8x128xf32> to vector<8x128xbf16>
    %c16_30 = arith.constant 16 : index
    %c0_31 = arith.constant 0 : index
    %50 = vector.load %arg8[%c16_30, %c0_31] : memref<72x128xbf16, #tpu.memory_space<vmem>>, vector<8x128xbf16>
    tpu.vector_store %arg8[%c16_30, %c0_31], %49 {strides = array<i32>} : memref<72x128xbf16, #tpu.memory_space<vmem>>, vector<8x128xbf16>,
    %c0_32 = arith.constant 0 : index
    %c16_33 = arith.constant 16 : index
    %51 = vector.load %arg7[%c0_32, %c16_33] : memref<8x162xf32, #tpu.memory_space<vmem>>, vector<8x128xf32>
    %cst_34 = arith.constant 0.000000e+00 : f32
    %52 = vector.shape_cast %31 : vector<1x128xi1> to vector<1x128xi1>
    %53 = vector.broadcast %52 : vector<1x128xi1> to vector<8x128xi1>
    %54 = vector.broadcast %cst_34 : f32 to vector<8x128xf32>
    %55 = arith.select %53, %54, %51 : vector<8x128xi1>, vector<8x128xf32>
    %56 = arith.truncf %55 : vector<8x128xf32> to vector<8x128xbf16>
    %c24 = arith.constant 24 : index
    %c0_35 = arith.constant 0 : index
    %57 = vector.load %arg8[%c24, %c0_35] : memref<72x128xbf16, #tpu.memory_space<vmem>>, vector<8x128xbf16>
    tpu.vector_store %arg8[%c24, %c0_35], %56 {strides = array<i32>} : memref<72x128xbf16, #tpu.memory_space<vmem>>, vector<8x128xbf16>,
    %c0_36 = arith.constant 0 : index
    %c17_37 = arith.constant 17 : index
    %58 = vector.load %arg7[%c0_36, %c17_37] : memref<8x162xf32, #tpu.memory_space<vmem>>, vector<8x128xf32>
    %59 = arith.truncf %58 : vector<8x128xf32> to vector<8x128xbf16>
    %c32 = arith.constant 32 : index
    %c0_38 = arith.constant 0 : index
    %60 = vector.load %arg8[%c32, %c0_38] : memref<72x128xbf16, #tpu.memory_space<vmem>>, vector<8x128xbf16>
    tpu.vector_store %arg8[%c32, %c0_38], %59 {strides = array<i32>} : memref<72x128xbf16, #tpu.memory_space<vmem>>, vector<8x128xbf16>,
    %c0_39 = arith.constant 0 : index
    %c18 = arith.constant 18 : index
    %61 = vector.load %arg7[%c0_39, %c18] : memref<8x162xf32, #tpu.memory_space<vmem>>, vector<8x128xf32>
    %cst_40 = arith.constant 0.000000e+00 : f32
    %62 = vector.shape_cast %33 : vector<1x128xi1> to vector<1x128xi1>
    %63 = vector.broadcast %62 : vector<1x128xi1> to vector<8x128xi1>
    %64 = vector.broadcast %cst_40 : f32 to vector<8x128xf32>
    %65 = arith.select %63, %64, %61 : vector<8x128xi1>, vector<8x128xf32>
    %66 = arith.truncf %65 : vector<8x128xf32> to vector<8x128xbf16>
    %c40 = arith.constant 40 : index
    %c0_41 = arith.constant 0 : index
    %67 = vector.load %arg8[%c40, %c0_41] : memref<72x128xbf16, #tpu.memory_space<vmem>>, vector<8x128xbf16>
    tpu.vector_store %arg8[%c40, %c0_41], %66 {strides = array<i32>} : memref<72x128xbf16, #tpu.memory_space<vmem>>, vector<8x128xbf16>,
    %c0_42 = arith.constant 0 : index
    %c32_43 = arith.constant 32 : index
    %68 = vector.load %arg7[%c0_42, %c32_43] : memref<8x162xf32, #tpu.memory_space<vmem>>, vector<8x128xf32>
    %cst_44 = arith.constant 0.000000e+00 : f32
    %69 = vector.shape_cast %31 : vector<1x128xi1> to vector<1x128xi1>
    %70 = vector.broadcast %69 : vector<1x128xi1> to vector<8x128xi1>
    %71 = vector.broadcast %cst_44 : f32 to vector<8x128xf32>
    %72 = arith.select %70, %71, %68 : vector<8x128xi1>, vector<8x128xf32>
    %73 = arith.truncf %72 : vector<8x128xf32> to vector<8x128xbf16>
    %c48 = arith.constant 48 : index
    %c0_45 = arith.constant 0 : index
    %74 = vector.load %arg8[%c48, %c0_45] : memref<72x128xbf16, #tpu.memory_space<vmem>>, vector<8x128xbf16>
    tpu.vector_store %arg8[%c48, %c0_45], %73 {strides = array<i32>} : memref<72x128xbf16, #tpu.memory_space<vmem>>, vector<8x128xbf16>,
    %c0_46 = arith.constant 0 : index
    %c33 = arith.constant 33 : index
    %75 = vector.load %arg7[%c0_46, %c33] : memref<8x162xf32, #tpu.memory_space<vmem>>, vector<8x128xf32>
    %76 = arith.truncf %75 : vector<8x128xf32> to vector<8x128xbf16>
    %c56 = arith.constant 56 : index
    %c0_47 = arith.constant 0 : index
    %77 = vector.load %arg8[%c56, %c0_47] : memref<72x128xbf16, #tpu.memory_space<vmem>>, vector<8x128xbf16>
    tpu.vector_store %arg8[%c56, %c0_47], %76 {strides = array<i32>} : memref<72x128xbf16, #tpu.memory_space<vmem>>, vector<8x128xbf16>,
    %c0_48 = arith.constant 0 : index
    %c34 = arith.constant 34 : index
    %78 = vector.load %arg7[%c0_48, %c34] : memref<8x162xf32, #tpu.memory_space<vmem>>, vector<8x128xf32>
    %cst_49 = arith.constant 0.000000e+00 : f32
    %79 = vector.shape_cast %33 : vector<1x128xi1> to vector<1x128xi1>
    %80 = vector.broadcast %79 : vector<1x128xi1> to vector<8x128xi1>
    %81 = vector.broadcast %cst_49 : f32 to vector<8x128xf32>
    %82 = arith.select %80, %81, %78 : vector<8x128xi1>, vector<8x128xf32>
    %83 = arith.truncf %82 : vector<8x128xf32> to vector<8x128xbf16>
    %c64 = arith.constant 64 : index
    %c0_50 = arith.constant 0 : index
    %84 = vector.load %arg8[%c64, %c0_50] : memref<72x128xbf16, #tpu.memory_space<vmem>>, vector<8x128xbf16>
    tpu.vector_store %arg8[%c64, %c0_50], %83 {strides = array<i32>} : memref<72x128xbf16, #tpu.memory_space<vmem>>, vector<8x128xbf16>,
    %c0_51 = arith.constant 0 : index
    %c0_52 = arith.constant 0 : index
    %85 = vector.load %arg4[%c0_51, %c0_52] : memref<16x72xbf16, #tpu.memory_space<vmem>>, vector<16x72xbf16>
    %c0_53 = arith.constant 0 : index
    %c0_54 = arith.constant 0 : index
    %86 = vector.load %arg8[%c0_53, %c0_54] : memref<72x128xbf16, #tpu.memory_space<vmem>>, vector<72x128xbf16>
    %cst_55 = arith.constant dense<0.000000e+00> : vector<16x128xf32>
    %87 = tpu.matmul %85, %86, %cst_55 {dimension_numbers = #tpu.dot_dimension_numbers<[1], [0], [0], [1], [0, 0, 1, 1], [], []>} : vector<16x72xbf16>, vector<72x128xbf16>, vector<16x128xf32> -> vector<16x128xf32>
    %c0_56 = arith.constant 0 : index
    %c0_57 = arith.constant 0 : index
    %88 = vector.load %arg5[%c0_56, %c0_57] : memref<16x1xf32, #tpu.memory_space<vmem>>, vector<16x1xf32>
    %89 = vector.broadcast %88 : vector<16x1xf32> to vector<16x128xf32>
    %90 = arith.addf %87, %89 : vector<16x128xf32>
    %c0_58 = arith.constant 0 : index
    %c0_59 = arith.constant 0 : index
    %c0_60 = arith.constant 0 : index
    %91 = vector.load %arg6[%c0_58, %c0_59, %c0_60] : memref<1x16x128xf32, #tpu.memory_space<vmem>>, vector<1x16x128xf32>
    %92 = vector.shape_cast %91 : vector<1x16x128xf32> to vector<16x128xf32>
    %93 = vector.shape_cast %90 : vector<16x128xf32> to vector<1x16x128xf32>
    tpu.vector_store %arg6[%c0_58, %c0_59, %c0_60], %93 {strides = array<i32>} : memref<1x16x128xf32, #tpu.memory_space<vmem>>, vector<1x16x128xf32>,
    return
  }
  func.func @transform_0(%arg0: i32, %arg1: i32) -> (i32, i32, i32) {
    %c0_i32 = arith.constant 0 : i32
    %c0_i32_0 = arith.constant 0 : i32
    return %arg0, %c0_i32, %arg1 : i32, i32, i32
  }
  func.func @transform_1(%arg0: i32, %arg1: i32) -> (i32, i32, i32, i32) {
    %c0_i32 = arith.constant 0 : i32
    %c0_i32_0 = arith.constant 0 : i32
    %c0_i32_1 = arith.constant 0 : i32
    return %arg0, %arg1, %c0_i32, %c0_i32_0 : i32, i32, i32, i32
  }
  func.func @transform_2(%arg0: i32, %arg1: i32) -> (i32, i32) {
    %c0_i32 = arith.constant 0 : i32
    %c0_i32_0 = arith.constant 0 : i32
    %c0_i32_1 = arith.constant 0 : i32
    return %c0_i32, %c0_i32_0 : i32, i32
  }
  func.func @transform_3(%arg0: i32, %arg1: i32) -> (i32, i32) {
    %c0_i32 = arith.constant 0 : i32
    %c0_i32_0 = arith.constant 0 : i32
    %c0_i32_1 = arith.constant 0 : i32
    return %c0_i32, %c0_i32_0 : i32, i32
  }
  func.func @transform_4(%arg0: i32, %arg1: i32) -> (i32, i32, i32) {
    %c0_i32 = arith.constant 0 : i32
    %c0_i32_0 = arith.constant 0 : i32
    return %arg0, %c0_i32, %arg1 : i32, i32, i32
  }
}

</mosaic_0001>

<llo_original>
// kernel: tpu_custom_call.1
$region0: #{tpu_custom_call.1}
  #allocation0 [shape = 'u32[]', space=smem, size = 0x4, offset = 0x4, fixed_abs, tag = 'smem constant byte address 0x4 - core index']
  #allocation1 [shape = 'u32[144,128]{1,0:T(1,128)}', space=vmem, size = 0x12000, scoped, tag = 'internal scratch']
  #allocation2 [shape = 'f32[8,162]{1,0:T(8,128)}', space=vmem, size = 0x2000, scoped, tag = 'scratch operand']
  #allocation3 [shape = 'bf16[72,128]{1,0:T(8,128)(2,1)}', space=vmem, size = 0x4800, scoped, tag = 'scratch operand']
  %s0 = inlined_call_operand.hbm [shape: f32[2,8,256], index: 0, kind: input, shape index: {}]
  %s1 = inlined_call_operand.hbm [shape: f32[2,2,8,32], index: 1, kind: input, shape index: {}]
  %s2 = inlined_call_operand.vmem [shape: bf16[16,72], index: 2, kind: input, shape index: {}]
  %s3 = inlined_call_operand.vmem [shape: f32[16,1], index: 3, kind: input, shape index: {}]
  %s4 = inlined_call_operand.hbm [shape: f32[2,16,256], index: 4, kind: output, shape index: {}]
  %s5 = sld [smem:[#allocation0]]
  $region57: #{tpu_custom_call.1} parent=0
    _
  %s7 = ssub.s32 1, %s5
  %s8 = scalar_select 0, %s7, %s5
  $region1: #{tpu_custom_call.1} parent=0
    #allocation4 [shape = 'u8[8192]{0}', space=vmem, size = 0x2000, scoped, tag = 'input window, operand 0']
    #allocation5 [shape = 's32[2]{0}', space=sflag, size = 0x8, scoped, tag = 'scoped memory for tpu_custom_call.1']
    #allocation6 [shape = 's32[2]{0}', space=sflag, size = 0x8, scoped, tag = 'scoped memory for tpu_custom_call.1']
    #allocation7 [shape = 'u8[8192]{0}', space=vmem, size = 0x2000, scoped, tag = 'input window, operand 1']
    #allocation8 [shape = 's32[2]{0}', space=sflag, size = 0x8, scoped, tag = 'scoped memory for tpu_custom_call.1']
    #allocation9 [shape = 'u8[16384]{0}', space=vmem, size = 0x4000, scoped, tag = 'output window, operand 0']
    %9 = vsyncpa [#allocation5], 0
    %s10 = scalar_lea.sflag [#allocation5], 1
    %11 = vsyncpa %s10, 0
    %12 = vsyncpa [#allocation8], 0
    %s13 = scalar_lea.sflag [#allocation8], 1
    %14 = vsyncpa %s13, 0
    %15 = vsyncpa [#allocation6], 0
    %s16 = scalar_lea.sflag [#allocation6], 1
    %17 = vsyncpa %s16, 0
    loop: start=0, step=1, limit=6
    $region2: #{tpu_custom_call.1} parent=1 // loop_pre_header
      _
    $region3: #{tpu_custom_call.1} parent=1 // loop_header
      %s19 = sphi 0, %s23
      %p20 = scmp.ge.s32.totalorder %s19, 6
      %s26 = sphi 0, %s38
      %s27 = sphi 0, %s34
      %s28 = sphi 0, %s26
      %s29 = sphi 0, %s27
      %s30 = sphi 0, %s28
      %s31 = sphi 0, %s29
      %s43 = sphi 0, %s45
      %s46 = sphi 0, %s43
      %s47 = sphi 0, %s46
      %s63 = sphi 0, %s47
      %s71 = sphi 0, %s73
      %s74 = sphi 0, %s71
      %s75 = sphi 0, %s74
      %s91 = sphi 0, %s75
      %s95 = sphi 0, %s95
      %s97 = sphi 0, %s95
      %s98 = sphi 0, %s97
      %s112 = sphi 0, %s98
      %s116 = sphi 0, %s116
      %s118 = sphi 0, %s116
      %s119 = sphi 0, %s118
      %s133 = sphi 0, %s119
      %s141 = sphi 0, %s143
      %s144 = sphi 0, %s141
      %s145 = sphi 0, %s144
      %s161 = sphi 0, %s145
    $region4: #{tpu_custom_call.1} parent=1 // loop_header_branch
      %22 = sbr.rel (%p20) target = $region8
    $region5: #{tpu_custom_call.1} parent=1 // loop_body
      %s24 = ssub.s32 %s19, 1
      %s25 = ssub.s32 %s19, 2
      %s32 = sadd.s32 1, %s27
      %p33 = scmp.ge.s32.totalorder %s32, 2
      %s34 = scalar_select %p33, 0, %s32
      %s35 = sadd.s32 1, %s26
      %s36 = scalar_select %p33, %s35, %s26
      %p37 = scmp.ge.s32.totalorder %s36, 2
      %s38 = scalar_select %p37, 0, %s36
      %s39 = ssub.s32 %s26, %s38
      %s40 = ssub.s32 %s27, %s34
      %s41 = sor.u32 %s39, %s40
      %p42 = scmp.eq.s32.totalorder %s41, 0
      %s44 = sadd.s32 %s43, 1
      %s45 = scalar_select %p42, %s43, %s44
      %p48 = pneg %p42
      %p49 = scmp.eq.s32.totalorder %s19, 3
      %p50 = por %p48, %p49
      %p51 = scmp.ne.s32.totalorder %s43, %s46
      %p52 = scmp.eq.s32.totalorder %s19, 0
      %p53 = por %p51, %p52
      %p54 = scmp.ne.s32.totalorder %s43, %s46
      %p55 = scmp.eq.s32.totalorder %s24, 3
      %p56 = por %p54, %p55
      %p57 = scmp.ne.s32.totalorder %s46, %s47
      %p58 = scmp.eq.s32.totalorder %s24, 0
      %p59 = por %p57, %p58
      %p60 = scmp.ne.s32.totalorder %s46, %s47
      %p61 = scmp.eq.s32.totalorder %s25, 3
      %p62 = por %p60, %p61
      %p64 = scmp.ne.s32.totalorder %s47, %s63
      %p65 = scmp.eq.s32.totalorder %s25, 0
      %p66 = por %p64, %p65
      %s67 = ssub.s32 %s26, %s38
      %s68 = ssub.s32 %s27, %s34
      %s69 = sor.u32 %s67, %s68
      %p70 = scmp.eq.s32.totalorder %s69, 0
      %s72 = sadd.s32 %s71, 1
      %s73 = scalar_select %p70, %s71, %s72
      %p76 = pneg %p70
      %p77 = scmp.eq.s32.totalorder %s19, 3
      %p78 = por %p76, %p77
      %p79 = scmp.ne.s32.totalorder %s71, %s74
      %p80 = scmp.eq.s32.totalorder %s19, 0
      %p81 = por %p79, %p80
      %p82 = scmp.ne.s32.totalorder %s71, %s74
      %p83 = scmp.eq.s32.totalorder %s24, 3
      %p84 = por %p82, %p83
      %p85 = scmp.ne.s32.totalorder %s74, %s75
      %p86 = scmp.eq.s32.totalorder %s24, 0
      %p87 = por %p85, %p86
      %p88 = scmp.ne.s32.totalorder %s74, %s75
      %p89 = scmp.eq.s32.totalorder %s25, 3
      %p90 = por %p88, %p89
      %p92 = scmp.ne.s32.totalorder %s75, %s91
      %p93 = scmp.eq.s32.totalorder %s25, 0
      %p94 = por %p92, %p93
      %s96 = sadd.s32 %s95, 1
      %p99 = scmp.eq.s32.totalorder %s19, 3
      %p100 = scmp.ne.s32.totalorder %s95, %s97
      %p101 = scmp.eq.s32.totalorder %s19, 0
      %p102 = por %p100, %p101
      %p103 = scmp.ne.s32.totalorder %s95, %s97
      %p104 = scmp.eq.s32.totalorder %s24, 3
      %p105 = por %p103, %p104
      %p106 = scmp.ne.s32.totalorder %s97, %s98
      %p107 = scmp.eq.s32.totalorder %s24, 0
      %p108 = por %p106, %p107
      %p109 = scmp.ne.s32.totalorder %s97, %s98
      %p110 = scmp.eq.s32.totalorder %s25, 3
      %p111 = por %p109, %p110
      %p113 = scmp.ne.s32.totalorder %s98, %s112
      %p114 = scmp.eq.s32.totalorder %s25, 0
      %p115 = por %p113, %p114
      %s117 = sadd.s32 %s116, 1
      %p120 = scmp.eq.s32.totalorder %s19, 3
      %p121 = scmp.ne.s32.totalorder %s116, %s118
      %p122 = scmp.eq.s32.totalorder %s19, 0
      %p123 = por %p121, %p122
      %p124 = scmp.ne.s32.totalorder %s116, %s118
      %p125 = scmp.eq.s32.totalorder %s24, 3
      %p126 = por %p124, %p125
      %p127 = scmp.ne.s32.totalorder %s118, %s119
      %p128 = scmp.eq.s32.totalorder %s24, 0
      %p129 = por %p127, %p128
      %p130 = scmp.ne.s32.totalorder %s118, %s119
      %p131 = scmp.eq.s32.totalorder %s25, 3
      %p132 = por %p130, %p131
      %p134 = scmp.ne.s32.totalorder %s119, %s133
      %p135 = scmp.eq.s32.totalorder %s25, 0
      %p136 = por %p134, %p135
      %s137 = ssub.s32 %s26, %s38
      %s138 = ssub.s32 %s27, %s34
      %s139 = sor.u32 %s137, %s138
      %p140 = scmp.eq.s32.totalorder %s139, 0
      %s142 = sadd.s32 %s141, 1
      %s143 = scalar_select %p140, %s141, %s142
      %p146 = pneg %p140
      %p147 = scmp.eq.s32.totalorder %s19, 3
      %p148 = por %p146, %p147
      %p149 = scmp.ne.s32.totalorder %s141, %s144
      %p150 = scmp.eq.s32.totalorder %s19, 0
      %p151 = por %p149, %p150
      %p152 = scmp.ne.s32.totalorder %s141, %s144
      %p153 = scmp.eq.s32.totalorder %s24, 3
      %p154 = por %p152, %p153
      %p155 = scmp.ne.s32.totalorder %s144, %s145
      %p156 = scmp.eq.s32.totalorder %s24, 0
      %p157 = por %p155, %p156
      %p158 = scmp.ne.s32.totalorder %s144, %s145
      %p159 = scmp.eq.s32.totalorder %s25, 3
      %p160 = por %p158, %p159
      %p162 = scmp.ne.s32.totalorder %s145, %s161
      %p163 = scmp.eq.s32.totalorder %s25, 0
      %p164 = por %p162, %p163
      %p165 = scmp.le.s32.totalorder 1, %s19
      %p166 = scmp.lt.s32.totalorder %s19, 5
      %p167 = pnand %p165, %p166
      %p168 = pneg %p167
      // Predicated region
      $region9: #{tpu_custom_call.1} parent=5 // pred_check
        _
      $region10: #{tpu_custom_call.1} parent=5 // pred_check_branch
        %170 = sbr.rel (%p167) target = $region12
      $region11: #{tpu_custom_call.1} parent=5 // pred_region
        %s171 = ssub.s32 %s19, 1
        // Predicated region
        $region13: #{tpu_custom_call.1} parent=11 // pred_check
          %p172 = pneg %p108
        $region14: #{tpu_custom_call.1} parent=11 // pred_check_branch
          %174 = sbr.rel (%p172) target = $region16
        $region15: #{tpu_custom_call.1} parent=11 // pred_region
          _
        $region16: #{tpu_custom_call.1} parent=11 // pred_fallthru
          _
        // Predicated region
        $region17: #{tpu_custom_call.1} parent=11 // pred_check
          %p175 = pneg %p129
        $region18: #{tpu_custom_call.1} parent=11 // pred_check_branch
          %177 = sbr.rel (%p175) target = $region20
        $region19: #{tpu_custom_call.1} parent=11 // pred_region
          _
        $region20: #{tpu_custom_call.1} parent=11 // pred_fallthru
          _
      $region12: #{tpu_custom_call.1} parent=5 // pred_fallthru
        _
      %p178 = scmp.lt.s32.totalorder %s19, 4
      // Predicated region
      $region21: #{tpu_custom_call.1} parent=5 // pred_check
        %p179 = pneg %p178
      $region22: #{tpu_custom_call.1} parent=5 // pred_check_branch
        %181 = sbr.rel (%p179) target = $region24
      $region23: #{tpu_custom_call.1} parent=5 // pred_region
        // Predicated region
        $region25: #{tpu_custom_call.1} parent=23 // pred_check
          %p182 = pneg %p53
        $region26: #{tpu_custom_call.1} parent=23 // pred_check_branch
          %184 = sbr.rel (%p182) target = $region28
        $region27: #{tpu_custom_call.1} parent=23 // pred_region
          %s185 = sand.u32 %s43, 1
          %s186 = scalar_lea.sflag [#allocation5], %s185
          %s187 = sand.u32 %s43, 1
          %s188 = smul.addr %s187, 8
          %s189 = scalar_lea.vmem [#allocation4], %s188
          %s191 = ssub.s32 128, 128
          %192 = vsyncadd %s186, %s191
          %s193 = smul.addr %s26, 2
          %s194 = sadd.s32 %s27, %s193
          %s195 = smul.addr %s194, 128
          %s196 = scalar_lea.hbm %s0, %s195
          %s198 = sshll.u32 %s189, 4
          %s199 = int_to_ptr.vmem [resolvable:$true] %s198
          %201 = dma.hbm_to_vmem [thread:$0]  %s196, 128, %s199, %s186
        $region28: #{tpu_custom_call.1} parent=23 // pred_fallthru
          _
        // Predicated region
        $region29: #{tpu_custom_call.1} parent=23 // pred_check
          %p202 = pneg %p81
        $region30: #{tpu_custom_call.1} parent=23 // pred_check_branch
          %204 = sbr.rel (%p202) target = $region32
        $region31: #{tpu_custom_call.1} parent=23 // pred_region
          %s205 = sand.u32 %s71, 1
          %s206 = scalar_lea.sflag [#allocation8], %s205
          %s207 = sand.u32 %s71, 1
          %s208 = smul.addr %s207, 8
          %s209 = scalar_lea.vmem [#allocation7], %s208
          %s211 = ssub.s32 128, 128
          %212 = vsyncadd %s206, %s211
          %s213 = smul.addr %s26, 2
          %s214 = sadd.s32 %s27, %s213
          %s215 = smul.addr %s214, 128
          %s216 = scalar_lea.hbm %s1, %s215
          %s218 = sshll.u32 %s209, 4
          %s219 = int_to_ptr.vmem [resolvable:$true] %s218
          %221 = dma.hbm_to_vmem [thread:$0]  %s216, 128, %s219, %s206
        $region32: #{tpu_custom_call.1} parent=23 // pred_fallthru
          _
      $region24: #{tpu_custom_call.1} parent=5 // pred_fallthru
        _
      %p222 = scmp.le.s32.totalorder 1, %s19
      %p223 = scmp.lt.s32.totalorder %s19, 5
      %p224 = pnand %p222, %p223
      %p225 = pneg %p224
      // Predicated region
      $region33: #{tpu_custom_call.1} parent=5 // pred_check
        _
      $region34: #{tpu_custom_call.1} parent=5 // pred_check_branch
        %227 = sbr.rel (%p224) target = $region36
      $region35: #{tpu_custom_call.1} parent=5 // pred_region
        %s228 = ssub.s32 %s19, 1
        %s229 = sand.u32 %s46, 1
        %s230 = scalar_lea.sflag [#allocation5], %s229
        %s231 = sand.u32 %s46, 1
        %s232 = smul.addr %s231, 8
        %s233 = scalar_lea.vmem [#allocation4], %s232
        // Predicated region
        $region37: #{tpu_custom_call.1} parent=35 // pred_check
          %p234 = pneg %p59
        $region38: #{tpu_custom_call.1} parent=35 // pred_check_branch
          %236 = sbr.rel (%p234) target = $region40
        $region39: #{tpu_custom_call.1} parent=35 // pred_region
          %237 = dma.done %s230, 128
        $region40: #{tpu_custom_call.1} parent=35 // pred_fallthru
          _
        %s238 = sand.u32 %s74, 1
        %s239 = scalar_lea.sflag [#allocation8], %s238
        %s240 = sand.u32 %s74, 1
        %s241 = smul.addr %s240, 8
        %s242 = scalar_lea.vmem [#allocation7], %s241
        // Predicated region
        $region41: #{tpu_custom_call.1} parent=35 // pred_check
          %p243 = pneg %p87
        $region42: #{tpu_custom_call.1} parent=35 // pred_check_branch
          %245 = sbr.rel (%p243) target = $region44
        $region43: #{tpu_custom_call.1} parent=35 // pred_region
          %246 = dma.done %s239, 128
        $region44: #{tpu_custom_call.1} parent=35 // pred_fallthru
          _
        %s247 = sand.u32 %s46, 1
        %s248 = scalar_lea.sflag [#allocation5], %s247
        %s249 = sand.u32 %s46, 1
        %s250 = smul.addr %s249, 8
        %s251 = scalar_lea.vmem [#allocation4], %s250
        %p252 = pneg %p59
        %p253 = pneg %p56
        %s254 = sand.u32 %s74, 1
        %s255 = scalar_lea.sflag [#allocation8], %s254
        %s256 = sand.u32 %s74, 1
        %s257 = smul.addr %s256, 8
        %s258 = scalar_lea.vmem [#allocation7], %s257
        %p259 = pneg %p87
        %p260 = pneg %p84
        %p261 = pneg %p108
        %p262 = pneg %p105
        %p263 = pneg %p129
        %p264 = pneg %p126
        %p265 = pneg %p157
        %p266 = pneg %p154
        %s267 = sand.u32 %s144, 1
        %s268 = scalar_lea.sflag [#allocation6], %s267
        %s269 = sand.u32 %s144, 1
        %s270 = smul.addr %s269, 16
        %s271 = scalar_lea.vmem [#allocation9], %s270
        %vm273 = vcmask 7168
        %274 = vst.msk [vmem:[#allocation2] sm:$0xff] %vm273, 0.0
        %v275 = vld [vmem:[%s242] sm:$0xff]
        %277 = vrot.lane.b32.xlu0 %v275, 1
        %v278 = vpop.permute.xlu0 %277
        %vm280 = vcmask 138248
        %281 = vst.msk [vmem:[#allocation2] sm:$0xff] %vm280, %v278
        %v282 = vld [vmem:[%s233] sm:$0xff]
        %284 = vrot.lane.b32.xlu0 %v282, 17
        %v285 = vpop.permute.xlu0 %284
        %vm287 = vcmask 1047688
        %288 = vst.msk [vmem:[#allocation2] sm:$0xff] %vm287, %v285
        %vm289 = vcmask 138240
        %290 = vst.msk [vmem:[#allocation2 + $0x8] sm:$0xff] %vm289, %v285
        %v291 = vld [vmem:[%s242] sm:$0xff]
        %293 = vrot.lane.b32.xlu0 %v291, 1
        %v294 = vpop.permute.xlu0 %293
        %vm296 = vcmask 269448
        %297 = vst.msk [vmem:[#allocation2 + $0x8] sm:$0xff] %vm296, %v294
        %vm298 = vcmask 277768
        %299 = vst.msk [vmem:[#allocation2 + $0x8] sm:$0xff] %vm298, 0.0
        %v300 = vlaneseq
        %v301 = vand.u32 %v300, 127
        %vm302 = vcmp.lt.s32.totalorder %v301, 0
        %v303 = vsub.s32 0, %v301
        %v304 = vsel %vm302, %v303, %v301
        %v305 = vshrl.u32 %v304, 4
        %v306 = vand.u32 %v304, 15
        %v307 = vsub.s32 0, %v306
        %v308 = vsel %vm302, %v307, %v306
        %vm309 = vcmp.ne.s32.totalorder %v308, 0
        %vm310 = vcmp.lt.s32.totalorder %v308, 0
        %vm311 = vmand %vm310, %vm309
        %v312 = vadd.s32 %v308, 16
        %v313 = vsel %vm311, %v312, %v308
        %vm314 = vcmp.eq.s32.totalorder %v313, 0
        %vm315 = vcmp.eq.s32.totalorder %v313, 15
        %v316 = vld [vmem:[#allocation2] sm:$0xff]
        %v317 = vsel %vm314, 1, 0
        %vm318 = vcmp.eq.s32.totalorder %v317, 1
        %v319 = vsel %vm318, 0.0, %v316
        %v320 = vpack.c.bf16 %v319, %v319
        %321 = vst [vmem:[#allocation3] sm:$0xf] %v320
        %v322 = vld [vmem:[#allocation2] sm:$0xff]
        %v323 = vld [vmem:[#allocation2 + $0x8] sm:$0xff]
        %v324 = vpack.c.bf16 %v322, %v322
        %v325 = vpack.c.bf16 %v323, %v323
        %v328 = vunpack.c.l.b16 %v324
        %v329 = vunpack.c.l.b16 %v325
        %v330 = vpack.c.b16 %v329, %v328
        %331 = vrot.lane.b32.xlu0 %v330, 127
        %v332 = vpop.permute.xlu0 %331
        %v333 = vrot.slane %v332, 4
        %vm334 = vcmask 1039360
        %v335 = vsel %vm334, %v332, %v333
        %337 = vst [vmem:[#allocation3 + $0x4] sm:$0xf] %v335
        %v338 = vld [vmem:[#allocation2] sm:$0xff]
        %v339 = vld [vmem:[#allocation2 + $0x8] sm:$0xff]
        %v340 = vsel %vm315, 1, 0
        %vm341 = vcmp.eq.s32.totalorder %v340, 1
        %344 = vrot.lane.b32.xlu0 %v338, 126
        %v345 = vpop.permute.xlu0 %344
        %346 = vrot.lane.b32.xlu0 %v339, 126
        %v347 = vpop.permute.xlu0 %346
        %vm348 = vcmask 1031168
        %v349 = vsel %vm348, %v345, %v347
        %v351 = vsel %vm341, 0.0, %v349
        %v352 = vpack.c.bf16 %v351, %v351
        %353 = vst [vmem:[#allocation3 + $0x8] sm:$0xf] %v352
        %v354 = vld [vmem:[#allocation2] sm:$0xff]
        %v355 = vld [vmem:[#allocation2 + $0x8] sm:$0xff]
        %358 = vrot.lane.b32.xlu0 %v354, 112
        %v359 = vpop.permute.xlu0 %358
        %360 = vrot.lane.b32.xlu0 %v355, 112
        %v361 = vpop.permute.xlu0 %360
        %vm362 = vcmask 916480
        %v363 = vsel %vm362, %v359, %v361
        %v365 = vsel %vm318, 0.0, %v363
        %v366 = vpack.c.bf16 %v365, %v365
        %367 = vst [vmem:[#allocation3 + $0xc] sm:$0xf] %v366
        %v368 = vld [vmem:[#allocation2] sm:$0xff]
        %v369 = vld [vmem:[#allocation2 + $0x8] sm:$0xff]
        %v370 = vpack.c.bf16 %v368, %v368
        %v371 = vpack.c.bf16 %v369, %v369
        %v374 = vunpack.c.l.b16 %v370
        %v375 = vunpack.c.l.b16 %v371
        %v376 = vpack.c.b16 %v375, %v374
        %377 = vrot.lane.b32.xlu0 %v376, 111
        %v378 = vpop.permute.xlu0 %377
        %v379 = vrot.slane %v378, 4
        %vm380 = vcmask 908288
        %v381 = vsel %vm380, %v378, %v379
        %383 = vst [vmem:[#allocation3 + $0x10] sm:$0xf] %v381
        %v384 = vld [vmem:[#allocation2] sm:$0xff]
        %v385 = vld [vmem:[#allocation2 + $0x8] sm:$0xff]
        %388 = vrot.lane.b32.xlu0 %v384, 110
        %v389 = vpop.permute.xlu0 %388
        %390 = vrot.lane.b32.xlu0 %v385, 110
        %v391 = vpop.permute.xlu0 %390
        %vm392 = vcmask 900096
        %v393 = vsel %vm392, %v389, %v391
        %v395 = vsel %vm341, 0.0, %v393
        %v396 = vpack.c.bf16 %v395, %v395
        %397 = vst [vmem:[#allocation3 + $0x14] sm:$0xf] %v396
        %v398 = vld [vmem:[#allocation2] sm:$0xff]
        %v399 = vld [vmem:[#allocation2 + $0x8] sm:$0xff]
        %402 = vrot.lane.b32.xlu0 %v398, 96
        %v403 = vpop.permute.xlu0 %402
        %404 = vrot.lane.b32.xlu0 %v399, 96
        %v405 = vpop.permute.xlu0 %404
        %vm406 = vcmask 785408
        %v407 = vsel %vm406, %v403, %v405
        %v409 = vsel %vm318, 0.0, %v407
        %v410 = vpack.c.bf16 %v409, %v409
        %411 = vst [vmem:[#allocation3 + $0x18] sm:$0xf] %v410
        %v412 = vld [vmem:[#allocation2] sm:$0xff]
        %v413 = vld [vmem:[#allocation2 + $0x8] sm:$0xff]
        %v414 = vpack.c.bf16 %v412, %v412
        %v415 = vpack.c.bf16 %v413, %v413
        %v418 = vunpack.c.l.b16 %v414
        %v419 = vunpack.c.l.b16 %v415
        %v420 = vpack.c.b16 %v419, %v418
        %421 = vrot.lane.b32.xlu0 %v420, 95
        %v422 = vpop.permute.xlu0 %421
        %v423 = vrot.slane %v422, 4
        %vm424 = vcmask 777216
        %v425 = vsel %vm424, %v422, %v423
        %427 = vst [vmem:[#allocation3 + $0x1c] sm:$0xf] %v425
        %v428 = vld [vmem:[#allocation2] sm:$0xff]
        %v429 = vld [vmem:[#allocation2 + $0x8] sm:$0xff]
        %432 = vrot.lane.b32.xlu0 %v428, 94
        %v433 = vpop.permute.xlu0 %432
        %434 = vrot.lane.b32.xlu0 %v429, 94
        %v435 = vpop.permute.xlu0 %434
        %vm436 = vcmask 769024
        %v437 = vsel %vm436, %v433, %v435
        %v439 = vsel %vm341, 0.0, %v437
        %v440 = vpack.c.bf16 %v439, %v439
        %441 = vst [vmem:[#allocation3 + $0x20] sm:$0xf] %v440
        %v442 = vld [vmem:[%s2] sm:$0xf]
        %v443 = vld [vmem:[%s2 + $0x4] sm:$0xf]
        %v444 = vld [vmem:[#allocation3] sm:$0xf]
        %v445 = vld [vmem:[#allocation3 + $0x4] sm:$0xf]
        %v446 = vld [vmem:[#allocation3 + $0x8] sm:$0xf]
        %v447 = vld [vmem:[#allocation3 + $0xc] sm:$0xf]
        %v448 = vld [vmem:[#allocation3 + $0x10] sm:$0xf]
        %v449 = vld [vmem:[#allocation3 + $0x14] sm:$0xf]
        %v450 = vld [vmem:[#allocation3 + $0x18] sm:$0xf]
        %v451 = vld [vmem:[#allocation3 + $0x1c] sm:$0xf]
        %v452 = vld [vmem:[#allocation3 + $0x20] sm:$0xf]
        %v453 = vld [vmem:[%s3] sm:$0xff]
        %v454 = vld [vmem:[%s3 + $0x8] sm:$0xff]
        %456 = vset.pattern.permute.xlu0 0
        %457 = vperm.xlu0 %456, %v453
        %v458 = vpop.permute.xlu0 %457
        %461 = vset.pattern.permute.xlu0 0
        %462 = vperm.xlu0 %461, %v454
        %v463 = vpop.permute.xlu0 %462
        %v467 = vunpack.c.l.b16 %v442
        %v468 = vunpack.c.l.b16 %v443
        %v469 = vpack.c.b16 %v468, %v467
        %v479 = vunpack.c.l.b16 %v444
        %v480 = vunpack.c.l.b16 %v445
        %v481 = vunpack.c.l.b16 %v446
        %v482 = vunpack.c.l.b16 %v447
        %v483 = vunpack.c.l.b16 %v448
        %v484 = vunpack.c.l.b16 %v449
        %v485 = vunpack.c.l.b16 %v450
        %v486 = vunpack.c.l.b16 %v451
        %v487 = vunpack.c.l.b16 %v452
        %v488 = vpack.c.b16 %v480, %v479
        %v489 = vpack.c.b16 %v482, %v481
        %v490 = vpack.c.b16 %v484, %v483
        %v491 = vpack.c.b16 %v486, %v485
        %v492 = vpack.c.b16 %v487, %v487
        %vm497 = vcmask 588800
        %v499 = vsel %vm497, %v469, 0
        %vm501 = vcmask 1043456
        %v503 = vsel %vm501, %v492, 0
        %505 = vmatprep.subr.bf16.mxu0 0
        %506 = vmatpush1.bf16.msra.mxu0 %v488
        %507 = vmatprep.subr.bf16.mxu0 0
        %508 = vmatpush1.bf16.msra.mxu0 %v489
        %509 = vmatprep.subr.bf16.mxu0 0
        %510 = vmatpush1.bf16.msra.mxu0 %v490
        %511 = vmatprep.subr.bf16.mxu0 0
        %512 = vmatpush1.bf16.msra.mxu0 %v491
        %513 = vmatprep.subr.bf16.mxu0 0
        %514 = vmatpush1.bf16.msra.mxu0 %v503
        %515 = vmatprep.subr.bf16.mxu0 0
        %516 = vmatpush1.bf16.msra.mxu0 0
        %517 = vmatprep.subr.bf16.mxu0 0
        %518 = vmatpush1.bf16.msra.mxu0 0
        %519 = vmatprep.subr.bf16.mxu0 0
        %520 = vmatpush1.bf16.msra.mxu0 0
        %521 = vmatprep.subr.bf16.mxu0 0
        %522 = vmatpush1.bf16.msra.mxu0 0
        %523 = vmatprep.subr.bf16.mxu0 0
        %524 = vmatpush1.bf16.msra.mxu0 0
        %525 = vmatprep.subr.bf16.mxu0 0
        %526 = vmatpush1.bf16.msra.mxu0 0
        %527 = vmatprep.subr.bf16.mxu0 0
        %528 = vmatpush1.bf16.msra.mxu0 0
        %529 = vmatprep.subr.bf16.mxu0 0
        %530 = vmatpush1.bf16.msra.mxu0 0
        %531 = vmatprep.subr.bf16.mxu0 0
        %532 = vmatpush1.bf16.msra.mxu0 0
        %533 = vmatprep.subr.bf16.mxu0 0
        %534 = vmatpush1.bf16.msra.mxu0 0
        %535 = vmatprep.subr.bf16.mxu0 0
        %536 = vmatpush1.bf16.msra.mxu0 0
        %537 = vmatprep.mubr.bf16.mxu0 0
        %538 = vmatmul.mubr.bf16.gmra.mrb[0].mxu0 %v499
        %v539 = vpop.f32.mrb[0].mxu0
        %v540 = vadd.f32 %v458, %v539
        %v541 = vpop.f32.mrb[0].mxu0
        %v542 = vpop.f32.mrb[0].mxu0
        %v543 = vadd.f32 %v463, %v542
        %v544 = vpop.f32.mrb[0].mxu0
        %545 = vdwg.mxu0
        %546 = vst [vmem:[%s271] sm:$0xff] %v540
        %547 = vst [vmem:[%s271 + $0x8] sm:$0xff] %v543
        %s548 = sand.u32 %s144, 1
        %s549 = scalar_lea.sflag [#allocation6], %s548
        %s550 = sand.u32 %s144, 1
        %s551 = smul.addr %s550, 16
        %s552 = scalar_lea.vmem [#allocation9], %s551
        // Predicated region
        $region45: #{tpu_custom_call.1} parent=35 // pred_check
          %p553 = pneg %p154
        $region46: #{tpu_custom_call.1} parent=35 // pred_check_branch
          %555 = sbr.rel (%p553) target = $region48
        $region47: #{tpu_custom_call.1} parent=35 // pred_region
          %s557 = ssub.s32 256, 256
          %558 = vsyncadd %s549, %s557
          %s559 = smul.addr %s28, 4
          %s560 = sadd.s32 %s29, %s559
          %s561 = smul.addr %s560, 128
          %s562 = scalar_lea.hbm %s4, %s561
          %s563 = sshll.u32 %s552, 4
          %s564 = int_to_ptr.vmem [resolvable:$true] %s563
          %569 = dma.vmem_to_hbm [thread:$0]  %s564, 256, %s562, %s549, 128, 256, 8
        $region48: #{tpu_custom_call.1} parent=35 // pred_fallthru
          _
      $region36: #{tpu_custom_call.1} parent=5 // pred_fallthru
        _
      %p570 = scmp.le.s32.totalorder 2, %s19
      // Predicated region
      $region49: #{tpu_custom_call.1} parent=5 // pred_check
        %p571 = pneg %p570
      $region50: #{tpu_custom_call.1} parent=5 // pred_check_branch
        %573 = sbr.rel (%p571) target = $region52
      $region51: #{tpu_custom_call.1} parent=5 // pred_region
        %s574 = ssub.s32 %s19, 2
        // Predicated region
        $region53: #{tpu_custom_call.1} parent=51 // pred_check
          %p575 = pneg %p160
        $region54: #{tpu_custom_call.1} parent=51 // pred_check_branch
          %577 = sbr.rel (%p575) target = $region56
        $region55: #{tpu_custom_call.1} parent=51 // pred_region
          %s578 = sand.u32 %s145, 1
          %s579 = scalar_lea.sflag [#allocation6], %s578
          %s580 = sand.u32 %s145, 1
          %s581 = smul.addr %s580, 16
          %s582 = scalar_lea.vmem [#allocation9], %s581
          %583 = dma.done %s579, 256
        $region56: #{tpu_custom_call.1} parent=51 // pred_fallthru
          _
      $region52: #{tpu_custom_call.1} parent=5 // pred_fallthru
        _
    $region6: #{tpu_custom_call.1} parent=1 // loop_footer
      %s23 = sadd.s32 1, %s19
    $region7: #{tpu_custom_call.1} parent=1 // loop_footer_branch
      %18 = sbr.rel target = $region3
    $region8: #{tpu_custom_call.1} parent=1 // loop_exit
      _
    %584 = vsyncpa [#allocation5], 1
    %s585 = scalar_lea.sflag [#allocation5], 1
    %586 = vsyncpa %s585, 1
    %587 = vsyncpa [#allocation8], 1
    %s588 = scalar_lea.sflag [#allocation8], 1
    %589 = vsyncpa %s588, 1
    %590 = vsyncpa [#allocation6], 1
    %s591 = scalar_lea.sflag [#allocation6], 1
    %592 = vsyncpa %s591, 1

</llo_original>
